<compile_context>
chip_gen: v5e
topology: v5e:2x2
jax: 0.10.0
libtpu: 0.0.40
codegen_flags: <defaults>
</compile_context>

<pallas_src>
import jax
import jax.numpy as jnp
from jax.experimental import pallas as pl
from jax.experimental.pallas import tpu as pltpu


# --------------------------------------------------------------------------- #
# Kernel body
# --------------------------------------------------------------------------- #
def _make_max_kernel(num_frames):
    def kernel(*refs):
        # refs = (x0_ref, ..., x{T-1}_ref, out_ref); each a (tm, lanes) VMEM tile.
        out_ref = refs[-1]
        acc = refs[0][...]
        # Sequential fold: keeps a single live accumulator (bounded VMEM temps).
        for r in refs[1:num_frames]:
            acc = jnp.maximum(acc, r[...])
        out_ref[...] = acc

    return kernel


# --------------------------------------------------------------------------- #
# Tiling policy
# --------------------------------------------------------------------------- #
def _sublane_align(dtype_size):
    """Native minimum sublane-tile multiple for this element size."""
    return {4: 8, 2: 16, 1: 32}.get(dtype_size, 8)


def _vmem_policy():
    """(budget_bytes, vmem_limit_bytes) chosen per TPU generation."""
    cap = None
    try:
        info = pltpu.get_tpu_info()
        cap = getattr(info, "vmem_capacity_bytes", None)
    except Exception:
        cap = None
    if cap is not None and cap <= 96 * 1024 * 1024:
        # v7x-class: 64 MiB physical VMEM per TensorCore; leave headroom for
        # Mosaic internal scratch and elementwise temporaries.
        return 28 * 1024 * 1024, 48 * 1024 * 1024
    if cap is not None:
        # v5e / v6e: 128 MiB physical VMEM (scoped default is only 16/32 MiB,
        # so we still raise vmem_limit_bytes explicitly).
        return 40 * 1024 * 1024, 80 * 1024 * 1024
    # Unknown backend (e.g. interpret mode): conservative defaults.
    return 24 * 1024 * 1024, 48 * 1024 * 1024


def _choose_layout(total_elems, nchw_shape, align):
    """Pick a lane-dense 2-D (rows, lanes) layout for a flattened frame."""
    lane_candidates = [l for l in range(1024, 127, -128) if total_elems % l == 0]
    # Pass 1: sublane-aligned row count with room for >= 2 blocks.
    for lanes in lane_candidates:
        rows = total_elems // lanes
        if rows % align == 0 and rows >= 2 * align:
            return rows, lanes
    # Pass 2: sublane-aligned row count.
    for lanes in lane_candidates:
        rows = total_elems // lanes
        if rows % align == 0:
            return rows, lanes
    # Pass 3: any multiple-of-128 lane count that divides the total.
    for lanes in lane_candidates:
        return total_elems // lanes, lanes
    # Fallback: keep (N*C*H, W); a block equal to the full dims is always legal,
    # though stores are masked when W < 128.
    n, c, h, w = nchw_shape
    return n * c * h, w


def _choose_tile_rows(rows, lanes, dtype_size, num_frames, budget_bytes, align):
    """Row-tile size: as large as the VMEM budget allows (2 buffers per input +
    2 for the output), aligned to the native sublane tile, with an even (>= 2)
    block count when there is enough work so the 'parallel' axis load-balances
    across v7x's two TensorCores.  The grid uses pl.cdiv, so tm need not divide
    `rows`; the partial last block is safe for a pure elementwise op."""
    if rows % align != 0:
        # Only a block equal to the full dim is legal for an unaligned dim.
        return rows
    per_row_bytes = lanes * dtype_size * (2 * num_frames + 2)
    tm = (budget_bytes // per_row_bytes) // align * align
    tm = max(align, min(tm, rows))
    if rows <= align:
        return tm
    nb = pl.cdiv(rows, tm)
    if nb >= 2 and nb % 2 == 0:
        return tm
    # Shrink (only) toward an even block count; bounded best-effort search.
    target = nb + 1 if (nb + 1) % 2 == 0 else nb + 2
    for _ in range(64):
        cand = pl.cdiv(pl.cdiv(rows, target), align) * align
        cand = max(align, min(cand, rows))
        nb_c = pl.cdiv(rows, cand)
        if nb_c >= 2 and nb_c % 2 == 0 and cand <= tm:
            return cand
        target += 2
    return tm


# --------------------------------------------------------------------------- #
# Public wrapper
# --------------------------------------------------------------------------- #
def maxpool_aggregation_head(xs, reference_frame_idx=None):
    """Elementwise max over a list of equally-shaped (N, C, H, W) feature maps."""
    del reference_frame_idx  # unused, as in the reference module
    num_frames = len(xs)
    shape = xs[0].shape
    dtype = xs[0].dtype
    assert all(x.shape == shape and x.dtype == dtype for x in xs)
    N, C, H, W = shape

    if num_frames == 1:
        return xs[0]

    total = N * C * H * W
    dsize = jnp.dtype(dtype).itemsize
    align = _sublane_align(dsize)
    budget_bytes, vmem_limit = _vmem_policy()

    rows, lanes = _choose_layout(total, shape, align)
    flat = [x.reshape(rows, lanes) for x in xs]          # free layout plumbing

    tm = _choose_tile_rows(rows, lanes, dsize, num_frames, budget_bytes, align)
    grid = (pl.cdiv(rows, tm),)

    # TODO(synk): if upstream can hand the frames as one contiguous
    # (T, rows, lanes) buffer, a 2-D grid with a resident accumulator would
    # decouple tile size from T (better for T >= ~16 on v7x).
    out = pl.pallas_call(
        _make_max_kernel(num_frames),
        out_shape=jax.ShapeDtypeStruct((rows, lanes), dtype),
        grid=grid,
        in_specs=[pl.BlockSpec((tm, lanes), lambda i: (i, 0))
                  for _ in range(num_frames)],
        out_specs=pl.BlockSpec((tm, lanes), lambda i: (i, 0)),
        compiler_params=pltpu.CompilerParams(
            dimension_semantics=("parallel",),
            vmem_limit_bytes=vmem_limit,
        ),
        cost_estimate=pl.CostEstimate(
            flops=(num_frames - 1) * total,
            transcendentals=0,
            bytes_accessed=(num_frames + 1) * total * dsize,
        ),
    )(*flat)

    return out.reshape(N, C, H, W)


if __name__ == "__main__":
    key = jax.random.PRNGKey(0)
    T, N, C, H, W = 8, 2, 4, 16, 16
    keys = jax.random.split(key, T)
    xs = [jax.random.normal(k, (N, C, H, W), dtype=jnp.float32) for k in keys]

    out = maxpool_aggregation_head(xs, reference_frame_idx=0)
    out = jax.block_until_ready(out)

    # Correctness check against the plain-JAX reference of torch.max(stack, dim=0).
    ref = jnp.max(jnp.stack(xs), axis=0)
    assert out.shape == (N, C, H, W)
    assert jnp.allclose(out, ref), "Pallas result mismatch vs reference"

    print("KERNEL_OK")
</pallas_src>

<mosaic_0001>
module attributes {stable_mosaic.version = 11 : i64} {
  func.func @kernel(%arg0: i32, %arg1: memref<8x128xf32, #tpu.memory_space<vmem>>, %arg2: memref<8x128xf32, #tpu.memory_space<vmem>>, %arg3: memref<8x128xf32, #tpu.memory_space<vmem>>, %arg4: memref<8x128xf32, #tpu.memory_space<vmem>>, %arg5: memref<8x128xf32, #tpu.memory_space<vmem>>, %arg6: memref<8x128xf32, #tpu.memory_space<vmem>>, %arg7: memref<8x128xf32, #tpu.memory_space<vmem>>, %arg8: memref<8x128xf32, #tpu.memory_space<vmem>>, %arg9: memref<8x128xf32, #tpu.memory_space<vmem>>) attributes {dimension_semantics = [#tpu.dimension_semantics<parallel>], iteration_bounds = array<i64: 2>, scalar_prefetch = 0 : i64, scratch_operands = 0 : i64, tpu.core_type = #tpu.core_type<tc>, window_params = [{transform_indices = @transform_0, window_bounds = array<i64: 8, 128>}, {transform_indices = @transform_1, window_bounds = array<i64: 8, 128>}, {transform_indices = @transform_2, window_bounds = array<i64: 8, 128>}, {transform_indices = @transform_3, window_bounds = array<i64: 8, 128>}, {transform_indices = @transform_4, window_bounds = array<i64: 8, 128>}, {transform_indices = @transform_5, window_bounds = array<i64: 8, 128>}, {transform_indices = @transform_6, window_bounds = array<i64: 8, 128>}, {transform_indices = @transform_7, window_bounds = array<i64: 8, 128>}, {transform_indices = @transform_8, window_bounds = array<i64: 8, 128>}]} {
    %c0 = arith.constant 0 : index
    %c0_0 = arith.constant 0 : index
    %0 = vector.load %arg1[%c0, %c0_0] : memref<8x128xf32, #tpu.memory_space<vmem>>, vector<8x128xf32>
    %c0_1 = arith.constant 0 : index
    %c0_2 = arith.constant 0 : index
    %1 = vector.load %arg2[%c0_1, %c0_2] : memref<8x128xf32, #tpu.memory_space<vmem>>, vector<8x128xf32>
    %2 = arith.maximumf %0, %1 : vector<8x128xf32>
    %c0_3 = arith.constant 0 : index
    %c0_4 = arith.constant 0 : index
    %3 = vector.load %arg3[%c0_3, %c0_4] : memref<8x128xf32, #tpu.memory_space<vmem>>, vector<8x128xf32>
    %4 = arith.maximumf %2, %3 : vector<8x128xf32>
    %c0_5 = arith.constant 0 : index
    %c0_6 = arith.constant 0 : index
    %5 = vector.load %arg4[%c0_5, %c0_6] : memref<8x128xf32, #tpu.memory_space<vmem>>, vector<8x128xf32>
    %6 = arith.maximumf %4, %5 : vector<8x128xf32>
    %c0_7 = arith.constant 0 : index
    %c0_8 = arith.constant 0 : index
    %7 = vector.load %arg5[%c0_7, %c0_8] : memref<8x128xf32, #tpu.memory_space<vmem>>, vector<8x128xf32>
    %8 = arith.maximumf %6, %7 : vector<8x128xf32>
    %c0_9 = arith.constant 0 : index
    %c0_10 = arith.constant 0 : index
    %9 = vector.load %arg6[%c0_9, %c0_10] : memref<8x128xf32, #tpu.memory_space<vmem>>, vector<8x128xf32>
    %10 = arith.maximumf %8, %9 : vector<8x128xf32>
    %c0_11 = arith.constant 0 : index
    %c0_12 = arith.constant 0 : index
    %11 = vector.load %arg7[%c0_11, %c0_12] : memref<8x128xf32, #tpu.memory_space<vmem>>, vector<8x128xf32>
    %12 = arith.maximumf %10, %11 : vector<8x128xf32>
    %c0_13 = arith.constant 0 : index
    %c0_14 = arith.constant 0 : index
    %13 = vector.load %arg8[%c0_13, %c0_14] : memref<8x128xf32, #tpu.memory_space<vmem>>, vector<8x128xf32>
    %14 = arith.maximumf %12, %13 : vector<8x128xf32>
    %c0_15 = arith.constant 0 : index
    %c0_16 = arith.constant 0 : index
    %15 = vector.load %arg9[%c0_15, %c0_16] : memref<8x128xf32, #tpu.memory_space<vmem>>, vector<8x128xf32>
    tpu.vector_store %arg9[%c0_15, %c0_16], %14 {strides = array<i32>} : memref<8x128xf32, #tpu.memory_space<vmem>>, vector<8x128xf32>,
    return
  }
  func.func @transform_0(%arg0: i32) -> (i32, i32) {
    %c0_i32 = arith.constant 0 : i32
    %c0_i32_0 = arith.constant 0 : i32
    return %arg0, %c0_i32 : i32, i32
  }
  func.func @transform_1(%arg0: i32) -> (i32, i32) {
    %c0_i32 = arith.constant 0 : i32
    %c0_i32_0 = arith.constant 0 : i32
    return %arg0, %c0_i32 : i32, i32
  }
  func.func @transform_2(%arg0: i32) -> (i32, i32) {
    %c0_i32 = arith.constant 0 : i32
    %c0_i32_0 = arith.constant 0 : i32
    return %arg0, %c0_i32 : i32, i32
  }
  func.func @transform_3(%arg0: i32) -> (i32, i32) {
    %c0_i32 = arith.constant 0 : i32
    %c0_i32_0 = arith.constant 0 : i32
    return %arg0, %c0_i32 : i32, i32
  }
  func.func @transform_4(%arg0: i32) -> (i32, i32) {
    %c0_i32 = arith.constant 0 : i32
    %c0_i32_0 = arith.constant 0 : i32
    return %arg0, %c0_i32 : i32, i32
  }
  func.func @transform_5(%arg0: i32) -> (i32, i32) {
    %c0_i32 = arith.constant 0 : i32
    %c0_i32_0 = arith.constant 0 : i32
    return %arg0, %c0_i32 : i32, i32
  }
  func.func @transform_6(%arg0: i32) -> (i32, i32) {
    %c0_i32 = arith.constant 0 : i32
    %c0_i32_0 = arith.constant 0 : i32
    return %arg0, %c0_i32 : i32, i32
  }
  func.func @transform_7(%arg0: i32) -> (i32, i32) {
    %c0_i32 = arith.constant 0 : i32
    %c0_i32_0 = arith.constant 0 : i32
    return %arg0, %c0_i32 : i32, i32
  }
  func.func @transform_8(%arg0: i32) -> (i32, i32) {
    %c0_i32 = arith.constant 0 : i32
    %c0_i32_0 = arith.constant 0 : i32
    return %arg0, %c0_i32 : i32, i32
  }
}

</mosaic_0001>

<llo_original>
// kernel: tpu_custom_call.1
$region0: #{tpu_custom_call.1}
  #allocation0 [shape = 'u32[]', space=smem, size = 0x4, offset = 0x4, fixed_abs, tag = 'smem constant byte address 0x4 - core index']
  #allocation1 [shape = 'u32[72,128]{1,0:T(1,128)}', space=vmem, size = 0x9000, scoped, tag = 'internal scratch']
  %s0 = inlined_call_operand.hbm [shape: f32[16,128], index: 0, kind: input, shape index: {}]
  %s1 = inlined_call_operand.hbm [shape: f32[16,128], index: 1, kind: input, shape index: {}]
  %s2 = inlined_call_operand.hbm [shape: f32[16,128], index: 2, kind: input, shape index: {}]
  %s3 = inlined_call_operand.hbm [shape: f32[16,128], index: 3, kind: input, shape index: {}]
  %s4 = inlined_call_operand.hbm [shape: f32[16,128], index: 4, kind: input, shape index: {}]
  %s5 = inlined_call_operand.hbm [shape: f32[16,128], index: 5, kind: input, shape index: {}]
  %s6 = inlined_call_operand.hbm [shape: f32[16,128], index: 6, kind: input, shape index: {}]
  %s7 = inlined_call_operand.hbm [shape: f32[16,128], index: 7, kind: input, shape index: {}]
  %s8 = inlined_call_operand.hbm [shape: f32[16,128], index: 8, kind: output, shape index: {}]
  %s9 = sld [smem:[#allocation0]]
  $region97: #{tpu_custom_call.1} parent=0
    _
  %s11 = ssub.s32 1, %s9
  %s12 = scalar_select 0, %s11, %s9
  $region1: #{tpu_custom_call.1} parent=0
    #allocation2 [shape = 'u8[8192]{0}', space=vmem, size = 0x2000, scoped, tag = 'input window, operand 0']
    #allocation3 [shape = 's32[2]{0}', space=sflag, size = 0x8, scoped, tag = 'scoped memory for tpu_custom_call.1']
    #allocation4 [shape = 's32[2]{0}', space=sflag, size = 0x8, scoped, tag = 'scoped memory for tpu_custom_call.1']
    #allocation5 [shape = 'u8[8192]{0}', space=vmem, size = 0x2000, scoped, tag = 'input window, operand 1']
    #allocation6 [shape = 's32[2]{0}', space=sflag, size = 0x8, scoped, tag = 'scoped memory for tpu_custom_call.1']
    #allocation7 [shape = 'u8[8192]{0}', space=vmem, size = 0x2000, scoped, tag = 'input window, operand 2']
    #allocation8 [shape = 'u8[8192]{0}', space=vmem, size = 0x2000, scoped, tag = 'input window, operand 3']
    #allocation9 [shape = 's32[2]{0}', space=sflag, size = 0x8, scoped, tag = 'scoped memory for tpu_custom_call.1']
    #allocation10 [shape = 'u8[8192]{0}', space=vmem, size = 0x2000, scoped, tag = 'input window, operand 4']
    #allocation11 [shape = 'u8[8192]{0}', space=vmem, size = 0x2000, scoped, tag = 'input window, operand 5']
    #allocation12 [shape = 's32[2]{0}', space=sflag, size = 0x8, scoped, tag = 'scoped memory for tpu_custom_call.1']
    #allocation13 [shape = 'u8[8192]{0}', space=vmem, size = 0x2000, scoped, tag = 'input window, operand 6']
    #allocation14 [shape = 'u8[8192]{0}', space=vmem, size = 0x2000, scoped, tag = 'input window, operand 7']
    #allocation15 [shape = 's32[2]{0}', space=sflag, size = 0x8, scoped, tag = 'scoped memory for tpu_custom_call.1']
    #allocation16 [shape = 'u8[8192]{0}', space=vmem, size = 0x2000, scoped, tag = 'output window, operand 0']
    %13 = vsyncpa [#allocation3], 0
    %s14 = scalar_lea.sflag [#allocation3], 1
    %15 = vsyncpa %s14, 0
    %16 = vsyncpa [#allocation6], 0
    %s17 = scalar_lea.sflag [#allocation6], 1
    %18 = vsyncpa %s17, 0
    %19 = vsyncpa [#allocation9], 0
    %s20 = scalar_lea.sflag [#allocation9], 1
    %21 = vsyncpa %s20, 0
    %22 = vsyncpa [#allocation12], 0
    %s23 = scalar_lea.sflag [#allocation12], 1
    %24 = vsyncpa %s23, 0
    %25 = vsyncpa [#allocation15], 0
    %s26 = scalar_lea.sflag [#allocation15], 1
    %27 = vsyncpa %s26, 0
    %28 = vsyncpa [#allocation4], 0
    %s29 = scalar_lea.sflag [#allocation4], 1
    %30 = vsyncpa %s29, 0
    loop: start=0, step=1, limit=4
    $region2: #{tpu_custom_call.1} parent=1 // loop_pre_header
      _
    $region3: #{tpu_custom_call.1} parent=1 // loop_header
      %s32 = sphi 0, %s36
      %p33 = scmp.ge.s32.totalorder %s32, 4
      %s42 = sphi 0, %s44
      %s45 = sphi 0, %s42
      %s46 = sphi 0, %s45
      %s62 = sphi 0, %s46
      %s68 = sphi 0, %s70
      %s71 = sphi 0, %s68
      %s72 = sphi 0, %s71
      %s88 = sphi 0, %s72
      %s94 = sphi 0, %s96
      %s97 = sphi 0, %s94
      %s98 = sphi 0, %s97
      %s114 = sphi 0, %s98
      %s120 = sphi 0, %s122
      %s123 = sphi 0, %s120
      %s124 = sphi 0, %s123
      %s140 = sphi 0, %s124
      %s146 = sphi 0, %s148
      %s149 = sphi 0, %s146
      %s150 = sphi 0, %s149
      %s166 = sphi 0, %s150
      %s172 = sphi 0, %s174
      %s175 = sphi 0, %s172
      %s176 = sphi 0, %s175
      %s192 = sphi 0, %s176
      %s198 = sphi 0, %s200
      %s201 = sphi 0, %s198
      %s202 = sphi 0, %s201
      %s218 = sphi 0, %s202
      %s224 = sphi 0, %s226
      %s227 = sphi 0, %s224
      %s228 = sphi 0, %s227
      %s244 = sphi 0, %s228
      %s250 = sphi 0, %s252
      %s253 = sphi 0, %s250
      %s254 = sphi 0, %s253
      %s270 = sphi 0, %s254
    $region4: #{tpu_custom_call.1} parent=1 // loop_header_branch
      %35 = sbr.rel (%p33) target = $region8
    $region5: #{tpu_custom_call.1} parent=1 // loop_body
      %s37 = ssub.s32 %s32, 1
      %s38 = ssub.s32 %s32, 2
      %s39 = sadd.s32 %s32, 1
      %s40 = ssub.s32 %s32, %s39
      %p41 = scmp.eq.s32.totalorder %s40, 0
      %s43 = sadd.s32 %s42, 1
      %s44 = scalar_select %p41, %s42, %s43
      %p47 = pneg %p41
      %p48 = scmp.eq.s32.totalorder %s32, 1
      %p49 = por %p47, %p48
      %p50 = scmp.ne.s32.totalorder %s42, %s45
      %p51 = scmp.eq.s32.totalorder %s32, 0
      %p52 = por %p50, %p51
      %p53 = scmp.ne.s32.totalorder %s42, %s45
      %p54 = scmp.eq.s32.totalorder %s37, 1
      %p55 = por %p53, %p54
      %p56 = scmp.ne.s32.totalorder %s45, %s46
      %p57 = scmp.eq.s32.totalorder %s37, 0
      %p58 = por %p56, %p57
      %p59 = scmp.ne.s32.totalorder %s45, %s46
      %p60 = scmp.eq.s32.totalorder %s38, 1
      %p61 = por %p59, %p60
      %p63 = scmp.ne.s32.totalorder %s46, %s62
      %p64 = scmp.eq.s32.totalorder %s38, 0
      %p65 = por %p63, %p64
      %s66 = ssub.s32 %s32, %s39
      %p67 = scmp.eq.s32.totalorder %s66, 0
      %s69 = sadd.s32 %s68, 1
      %s70 = scalar_select %p67, %s68, %s69
      %p73 = pneg %p67
      %p74 = scmp.eq.s32.totalorder %s32, 1
      %p75 = por %p73, %p74
      %p76 = scmp.ne.s32.totalorder %s68, %s71
      %p77 = scmp.eq.s32.totalorder %s32, 0
      %p78 = por %p76, %p77
      %p79 = scmp.ne.s32.totalorder %s68, %s71
      %p80 = scmp.eq.s32.totalorder %s37, 1
      %p81 = por %p79, %p80
      %p82 = scmp.ne.s32.totalorder %s71, %s72
      %p83 = scmp.eq.s32.totalorder %s37, 0
      %p84 = por %p82, %p83
      %p85 = scmp.ne.s32.totalorder %s71, %s72
      %p86 = scmp.eq.s32.totalorder %s38, 1
      %p87 = por %p85, %p86
      %p89 = scmp.ne.s32.totalorder %s72, %s88
      %p90 = scmp.eq.s32.totalorder %s38, 0
      %p91 = por %p89, %p90
      %s92 = ssub.s32 %s32, %s39
      %p93 = scmp.eq.s32.totalorder %s92, 0
      %s95 = sadd.s32 %s94, 1
      %s96 = scalar_select %p93, %s94, %s95
      %p99 = pneg %p93
      %p100 = scmp.eq.s32.totalorder %s32, 1
      %p101 = por %p99, %p100
      %p102 = scmp.ne.s32.totalorder %s94, %s97
      %p103 = scmp.eq.s32.totalorder %s32, 0
      %p104 = por %p102, %p103
      %p105 = scmp.ne.s32.totalorder %s94, %s97
      %p106 = scmp.eq.s32.totalorder %s37, 1
      %p107 = por %p105, %p106
      %p108 = scmp.ne.s32.totalorder %s97, %s98
      %p109 = scmp.eq.s32.totalorder %s37, 0
      %p110 = por %p108, %p109
      %p111 = scmp.ne.s32.totalorder %s97, %s98
      %p112 = scmp.eq.s32.totalorder %s38, 1
      %p113 = por %p111, %p112
      %p115 = scmp.ne.s32.totalorder %s98, %s114
      %p116 = scmp.eq.s32.totalorder %s38, 0
      %p117 = por %p115, %p116
      %s118 = ssub.s32 %s32, %s39
      %p119 = scmp.eq.s32.totalorder %s118, 0
      %s121 = sadd.s32 %s120, 1
      %s122 = scalar_select %p119, %s120, %s121
      %p125 = pneg %p119
      %p126 = scmp.eq.s32.totalorder %s32, 1
      %p127 = por %p125, %p126
      %p128 = scmp.ne.s32.totalorder %s120, %s123
      %p129 = scmp.eq.s32.totalorder %s32, 0
      %p130 = por %p128, %p129
      %p131 = scmp.ne.s32.totalorder %s120, %s123
      %p132 = scmp.eq.s32.totalorder %s37, 1
      %p133 = por %p131, %p132
      %p134 = scmp.ne.s32.totalorder %s123, %s124
      %p135 = scmp.eq.s32.totalorder %s37, 0
      %p136 = por %p134, %p135
      %p137 = scmp.ne.s32.totalorder %s123, %s124
      %p138 = scmp.eq.s32.totalorder %s38, 1
      %p139 = por %p137, %p138
      %p141 = scmp.ne.s32.totalorder %s124, %s140
      %p142 = scmp.eq.s32.totalorder %s38, 0
      %p143 = por %p141, %p142
      %s144 = ssub.s32 %s32, %s39
      %p145 = scmp.eq.s32.totalorder %s144, 0
      %s147 = sadd.s32 %s146, 1
      %s148 = scalar_select %p145, %s146, %s147
      %p151 = pneg %p145
      %p152 = scmp.eq.s32.totalorder %s32, 1
      %p153 = por %p151, %p152
      %p154 = scmp.ne.s32.totalorder %s146, %s149
      %p155 = scmp.eq.s32.totalorder %s32, 0
      %p156 = por %p154, %p155
      %p157 = scmp.ne.s32.totalorder %s146, %s149
      %p158 = scmp.eq.s32.totalorder %s37, 1
      %p159 = por %p157, %p158
      %p160 = scmp.ne.s32.totalorder %s149, %s150
      %p161 = scmp.eq.s32.totalorder %s37, 0
      %p162 = por %p160, %p161
      %p163 = scmp.ne.s32.totalorder %s149, %s150
      %p164 = scmp.eq.s32.totalorder %s38, 1
      %p165 = por %p163, %p164
      %p167 = scmp.ne.s32.totalorder %s150, %s166
      %p168 = scmp.eq.s32.totalorder %s38, 0
      %p169 = por %p167, %p168
      %s170 = ssub.s32 %s32, %s39
      %p171 = scmp.eq.s32.totalorder %s170, 0
      %s173 = sadd.s32 %s172, 1
      %s174 = scalar_select %p171, %s172, %s173
      %p177 = pneg %p171
      %p178 = scmp.eq.s32.totalorder %s32, 1
      %p179 = por %p177, %p178
      %p180 = scmp.ne.s32.totalorder %s172, %s175
      %p181 = scmp.eq.s32.totalorder %s32, 0
      %p182 = por %p180, %p181
      %p183 = scmp.ne.s32.totalorder %s172, %s175
      %p184 = scmp.eq.s32.totalorder %s37, 1
      %p185 = por %p183, %p184
      %p186 = scmp.ne.s32.totalorder %s175, %s176
      %p187 = scmp.eq.s32.totalorder %s37, 0
      %p188 = por %p186, %p187
      %p189 = scmp.ne.s32.totalorder %s175, %s176
      %p190 = scmp.eq.s32.totalorder %s38, 1
      %p191 = por %p189, %p190
      %p193 = scmp.ne.s32.totalorder %s176, %s192
      %p194 = scmp.eq.s32.totalorder %s38, 0
      %p195 = por %p193, %p194
      %s196 = ssub.s32 %s32, %s39
      %p197 = scmp.eq.s32.totalorder %s196, 0
      %s199 = sadd.s32 %s198, 1
      %s200 = scalar_select %p197, %s198, %s199
      %p203 = pneg %p197
      %p204 = scmp.eq.s32.totalorder %s32, 1
      %p205 = por %p203, %p204
      %p206 = scmp.ne.s32.totalorder %s198, %s201
      %p207 = scmp.eq.s32.totalorder %s32, 0
      %p208 = por %p206, %p207
      %p209 = scmp.ne.s32.totalorder %s198, %s201
      %p210 = scmp.eq.s32.totalorder %s37, 1
      %p211 = por %p209, %p210
      %p212 = scmp.ne.s32.totalorder %s201, %s202
      %p213 = scmp.eq.s32.totalorder %s37, 0
      %p214 = por %p212, %p213
      %p215 = scmp.ne.s32.totalorder %s201, %s202
      %p216 = scmp.eq.s32.totalorder %s38, 1
      %p217 = por %p215, %p216
      %p219 = scmp.ne.s32.totalorder %s202, %s218
      %p220 = scmp.eq.s32.totalorder %s38, 0
      %p221 = por %p219, %p220
      %s222 = ssub.s32 %s32, %s39
      %p223 = scmp.eq.s32.totalorder %s222, 0
      %s225 = sadd.s32 %s224, 1
      %s226 = scalar_select %p223, %s224, %s225
      %p229 = pneg %p223
      %p230 = scmp.eq.s32.totalorder %s32, 1
      %p231 = por %p229, %p230
      %p232 = scmp.ne.s32.totalorder %s224, %s227
      %p233 = scmp.eq.s32.totalorder %s32, 0
      %p234 = por %p232, %p233
      %p235 = scmp.ne.s32.totalorder %s224, %s227
      %p236 = scmp.eq.s32.totalorder %s37, 1
      %p237 = por %p235, %p236
      %p238 = scmp.ne.s32.totalorder %s227, %s228
      %p239 = scmp.eq.s32.totalorder %s37, 0
      %p240 = por %p238, %p239
      %p241 = scmp.ne.s32.totalorder %s227, %s228
      %p242 = scmp.eq.s32.totalorder %s38, 1
      %p243 = por %p241, %p242
      %p245 = scmp.ne.s32.totalorder %s228, %s244
      %p246 = scmp.eq.s32.totalorder %s38, 0
      %p247 = por %p245, %p246
      %s248 = ssub.s32 %s32, %s39
      %p249 = scmp.eq.s32.totalorder %s248, 0
      %s251 = sadd.s32 %s250, 1
      %s252 = scalar_select %p249, %s250, %s251
      %p255 = pneg %p249
      %p256 = scmp.eq.s32.totalorder %s32, 1
      %p257 = por %p255, %p256
      %p258 = scmp.ne.s32.totalorder %s250, %s253
      %p259 = scmp.eq.s32.totalorder %s32, 0
      %p260 = por %p258, %p259
      %p261 = scmp.ne.s32.totalorder %s250, %s253
      %p262 = scmp.eq.s32.totalorder %s37, 1
      %p263 = por %p261, %p262
      %p264 = scmp.ne.s32.totalorder %s253, %s254
      %p265 = scmp.eq.s32.totalorder %s37, 0
      %p266 = por %p264, %p265
      %p267 = scmp.ne.s32.totalorder %s253, %s254
      %p268 = scmp.eq.s32.totalorder %s38, 1
      %p269 = por %p267, %p268
      %p271 = scmp.ne.s32.totalorder %s254, %s270
      %p272 = scmp.eq.s32.totalorder %s38, 0
      %p273 = por %p271, %p272
      %p274 = scmp.le.s32.totalorder 1, %s32
      %p275 = scmp.lt.s32.totalorder %s32, 3
      %p276 = pnand %p274, %p275
      %p277 = pneg %p276
      // Predicated region
      $region9: #{tpu_custom_call.1} parent=5 // pred_check
        _
      $region10: #{tpu_custom_call.1} parent=5 // pred_check_branch
        %279 = sbr.rel (%p276) target = $region12
      $region11: #{tpu_custom_call.1} parent=5 // pred_region
        %s280 = ssub.s32 %s32, 1
      $region12: #{tpu_custom_call.1} parent=5 // pred_fallthru
        _
      %p281 = scmp.lt.s32.totalorder %s32, 2
      // Predicated region
      $region13: #{tpu_custom_call.1} parent=5 // pred_check
        %p282 = pneg %p281
      $region14: #{tpu_custom_call.1} parent=5 // pred_check_branch
        %284 = sbr.rel (%p282) target = $region16
      $region15: #{tpu_custom_call.1} parent=5 // pred_region
        // Predicated region
        $region17: #{tpu_custom_call.1} parent=15 // pred_check
          %p285 = pneg %p52
        $region18: #{tpu_custom_call.1} parent=15 // pred_check_branch
          %287 = sbr.rel (%p285) target = $region20
        $region19: #{tpu_custom_call.1} parent=15 // pred_region
          %s288 = sand.u32 %s42, 1
          %s289 = scalar_lea.sflag [#allocation3], %s288
          %s290 = sand.u32 %s42, 1
          %s291 = smul.addr %s290, 8
          %s292 = scalar_lea.vmem [#allocation2], %s291
          %294 = vsyncadd %s289, 0
          %s295 = smul.addr %s32, 8
          %s296 = scalar_lea.hbm %s0, %s295
          %s298 = sshll.u32 %s296, 4
          %s299 = int_to_ptr.hbm [resolvable:$true] %s298
          %s300 = sshll.u32 %s292, 4
          %s301 = int_to_ptr.vmem [resolvable:$true] %s300
          %303 = dma.hbm_to_vmem [thread:$0]  %s299, 128, %s301, %s289
        $region20: #{tpu_custom_call.1} parent=15 // pred_fallthru
          _
        // Predicated region
        $region21: #{tpu_custom_call.1} parent=15 // pred_check
          %p304 = pneg %p78
        $region22: #{tpu_custom_call.1} parent=15 // pred_check_branch
          %306 = sbr.rel (%p304) target = $region24
        $region23: #{tpu_custom_call.1} parent=15 // pred_region
          %s307 = sand.u32 %s32, 1
          %s308 = scalar_lea.sflag [#allocation6], %s307
          %s309 = sand.u32 %s68, 1
          %s310 = smul.addr %s309, 8
          %s311 = scalar_lea.vmem [#allocation5], %s310
          %313 = vsyncadd %s308, 0
          %s314 = smul.addr %s32, 8
          %s315 = scalar_lea.hbm %s1, %s314
          %s317 = sshll.u32 %s315, 4
          %s318 = int_to_ptr.hbm [resolvable:$true] %s317
          %s319 = sshll.u32 %s311, 4
          %s320 = int_to_ptr.vmem [resolvable:$true] %s319
          %322 = dma.hbm_to_vmem [thread:$0]  %s318, 128, %s320, %s308
        $region24: #{tpu_custom_call.1} parent=15 // pred_fallthru
          _
        // Predicated region
        $region25: #{tpu_custom_call.1} parent=15 // pred_check
          %p323 = pneg %p104
        $region26: #{tpu_custom_call.1} parent=15 // pred_check_branch
          %325 = sbr.rel (%p323) target = $region28
        $region27: #{tpu_custom_call.1} parent=15 // pred_region
          %s326 = sand.u32 %s32, 1
          %s327 = scalar_lea.sflag [#allocation6], %s326
          %s328 = sand.u32 %s94, 1
          %s329 = smul.addr %s328, 8
          %s330 = scalar_lea.vmem [#allocation7], %s329
          %332 = vsyncadd %s327, 0
          %s333 = smul.addr %s32, 8
          %s334 = scalar_lea.hbm %s2, %s333
          %s336 = sshll.u32 %s334, 4
          %s337 = int_to_ptr.hbm [resolvable:$true] %s336
          %s338 = sshll.u32 %s330, 4
          %s339 = int_to_ptr.vmem [resolvable:$true] %s338
          %341 = dma.hbm_to_vmem [thread:$0]  %s337, 128, %s339, %s327
        $region28: #{tpu_custom_call.1} parent=15 // pred_fallthru
          _
        // Predicated region
        $region29: #{tpu_custom_call.1} parent=15 // pred_check
          %p342 = pneg %p130
        $region30: #{tpu_custom_call.1} parent=15 // pred_check_branch
          %344 = sbr.rel (%p342) target = $region32
        $region31: #{tpu_custom_call.1} parent=15 // pred_region
          %s345 = sand.u32 %s32, 1
          %s346 = scalar_lea.sflag [#allocation9], %s345
          %s347 = sand.u32 %s120, 1
          %s348 = smul.addr %s347, 8
          %s349 = scalar_lea.vmem [#allocation8], %s348
          %351 = vsyncadd %s346, 0
          %s352 = smul.addr %s32, 8
          %s353 = scalar_lea.hbm %s3, %s352
          %s355 = sshll.u32 %s353, 4
          %s356 = int_to_ptr.hbm [resolvable:$true] %s355
          %s357 = sshll.u32 %s349, 4
          %s358 = int_to_ptr.vmem [resolvable:$true] %s357
          %360 = dma.hbm_to_vmem [thread:$0]  %s356, 128, %s358, %s346
        $region32: #{tpu_custom_call.1} parent=15 // pred_fallthru
          _
        // Predicated region
        $region33: #{tpu_custom_call.1} parent=15 // pred_check
          %p361 = pneg %p156
        $region34: #{tpu_custom_call.1} parent=15 // pred_check_branch
          %363 = sbr.rel (%p361) target = $region36
        $region35: #{tpu_custom_call.1} parent=15 // pred_region
          %s364 = sand.u32 %s32, 1
          %s365 = scalar_lea.sflag [#allocation9], %s364
          %s366 = sand.u32 %s146, 1
          %s367 = smul.addr %s366, 8
          %s368 = scalar_lea.vmem [#allocation10], %s367
          %370 = vsyncadd %s365, 0
          %s371 = smul.addr %s32, 8
          %s372 = scalar_lea.hbm %s4, %s371
          %s374 = sshll.u32 %s372, 4
          %s375 = int_to_ptr.hbm [resolvable:$true] %s374
          %s376 = sshll.u32 %s368, 4
          %s377 = int_to_ptr.vmem [resolvable:$true] %s376
          %379 = dma.hbm_to_vmem [thread:$0]  %s375, 128, %s377, %s365
        $region36: #{tpu_custom_call.1} parent=15 // pred_fallthru
          _
        // Predicated region
        $region37: #{tpu_custom_call.1} parent=15 // pred_check
          %p380 = pneg %p182
        $region38: #{tpu_custom_call.1} parent=15 // pred_check_branch
          %382 = sbr.rel (%p380) target = $region40
        $region39: #{tpu_custom_call.1} parent=15 // pred_region
          %s383 = sand.u32 %s32, 1
          %s384 = scalar_lea.sflag [#allocation12], %s383
          %s385 = sand.u32 %s172, 1
          %s386 = smul.addr %s385, 8
          %s387 = scalar_lea.vmem [#allocation11], %s386
          %389 = vsyncadd %s384, 0
          %s390 = smul.addr %s32, 8
          %s391 = scalar_lea.hbm %s5, %s390
          %s393 = sshll.u32 %s391, 4
          %s394 = int_to_ptr.hbm [resolvable:$true] %s393
          %s395 = sshll.u32 %s387, 4
          %s396 = int_to_ptr.vmem [resolvable:$true] %s395
          %398 = dma.hbm_to_vmem [thread:$0]  %s394, 128, %s396, %s384
        $region40: #{tpu_custom_call.1} parent=15 // pred_fallthru
          _
        // Predicated region
        $region41: #{tpu_custom_call.1} parent=15 // pred_check
          %p399 = pneg %p208
        $region42: #{tpu_custom_call.1} parent=15 // pred_check_branch
          %401 = sbr.rel (%p399) target = $region44
        $region43: #{tpu_custom_call.1} parent=15 // pred_region
          %s402 = sand.u32 %s32, 1
          %s403 = scalar_lea.sflag [#allocation12], %s402
          %s404 = sand.u32 %s198, 1
          %s405 = smul.addr %s404, 8
          %s406 = scalar_lea.vmem [#allocation13], %s405
          %408 = vsyncadd %s403, 0
          %s409 = smul.addr %s32, 8
          %s410 = scalar_lea.hbm %s6, %s409
          %s412 = sshll.u32 %s410, 4
          %s413 = int_to_ptr.hbm [resolvable:$true] %s412
          %s414 = sshll.u32 %s406, 4
          %s415 = int_to_ptr.vmem [resolvable:$true] %s414
          %417 = dma.hbm_to_vmem [thread:$0]  %s413, 128, %s415, %s403
        $region44: #{tpu_custom_call.1} parent=15 // pred_fallthru
          _
        // Predicated region
        $region45: #{tpu_custom_call.1} parent=15 // pred_check
          %p418 = pneg %p234
        $region46: #{tpu_custom_call.1} parent=15 // pred_check_branch
          %420 = sbr.rel (%p418) target = $region48
        $region47: #{tpu_custom_call.1} parent=15 // pred_region
          %s421 = sand.u32 %s224, 1
          %s422 = scalar_lea.sflag [#allocation15], %s421
          %s423 = sand.u32 %s224, 1
          %s424 = smul.addr %s423, 8
          %s425 = scalar_lea.vmem [#allocation14], %s424
          %427 = vsyncadd %s422, 0
          %s428 = smul.addr %s32, 8
          %s429 = scalar_lea.hbm %s7, %s428
          %s431 = sshll.u32 %s429, 4
          %s432 = int_to_ptr.hbm [resolvable:$true] %s431
          %s433 = sshll.u32 %s425, 4
          %s434 = int_to_ptr.vmem [resolvable:$true] %s433
          %436 = dma.hbm_to_vmem [thread:$0]  %s432, 128, %s434, %s422
        $region48: #{tpu_custom_call.1} parent=15 // pred_fallthru
          _
      $region16: #{tpu_custom_call.1} parent=5 // pred_fallthru
        _
      %p437 = scmp.le.s32.totalorder 1, %s32
      %p438 = scmp.lt.s32.totalorder %s32, 3
      %p439 = pnand %p437, %p438
      %p440 = pneg %p439
      // Predicated region
      $region49: #{tpu_custom_call.1} parent=5 // pred_check
        _
      $region50: #{tpu_custom_call.1} parent=5 // pred_check_branch
        %442 = sbr.rel (%p439) target = $region52
      $region51: #{tpu_custom_call.1} parent=5 // pred_region
        %s443 = ssub.s32 %s32, 1
        %s444 = sand.u32 %s45, 1
        %s445 = scalar_lea.sflag [#allocation3], %s444
        %s446 = sand.u32 %s45, 1
        %s447 = smul.addr %s446, 8
        %s448 = scalar_lea.vmem [#allocation2], %s447
        // Predicated region
        $region53: #{tpu_custom_call.1} parent=51 // pred_check
          %p449 = pneg %p58
        $region54: #{tpu_custom_call.1} parent=51 // pred_check_branch
          %451 = sbr.rel (%p449) target = $region56
        $region55: #{tpu_custom_call.1} parent=51 // pred_region
          %453 = dma.done %s445, 128
        $region56: #{tpu_custom_call.1} parent=51 // pred_fallthru
          _
        %s454 = sand.u32 %s37, 1
        %s455 = scalar_lea.sflag [#allocation6], %s454
        %s456 = sand.u32 %s71, 1
        %s457 = smul.addr %s456, 8
        %s458 = scalar_lea.vmem [#allocation5], %s457
        // Predicated region
        $region57: #{tpu_custom_call.1} parent=51 // pred_check
          %p459 = pneg %p84
        $region58: #{tpu_custom_call.1} parent=51 // pred_check_branch
          %461 = sbr.rel (%p459) target = $region60
        $region59: #{tpu_custom_call.1} parent=51 // pred_region
          %463 = dma.done %s455, 128
        $region60: #{tpu_custom_call.1} parent=51 // pred_fallthru
          _
        %s464 = sand.u32 %s37, 1
        %s465 = scalar_lea.sflag [#allocation6], %s464
        %s466 = sand.u32 %s97, 1
        %s467 = smul.addr %s466, 8
        %s468 = scalar_lea.vmem [#allocation7], %s467
        // Predicated region
        $region61: #{tpu_custom_call.1} parent=51 // pred_check
          %p469 = pneg %p110
        $region62: #{tpu_custom_call.1} parent=51 // pred_check_branch
          %471 = sbr.rel (%p469) target = $region64
        $region63: #{tpu_custom_call.1} parent=51 // pred_region
          %473 = dma.done %s465, 128
        $region64: #{tpu_custom_call.1} parent=51 // pred_fallthru
          _
        %s474 = sand.u32 %s37, 1
        %s475 = scalar_lea.sflag [#allocation9], %s474
        %s476 = sand.u32 %s123, 1
        %s477 = smul.addr %s476, 8
        %s478 = scalar_lea.vmem [#allocation8], %s477
        // Predicated region
        $region65: #{tpu_custom_call.1} parent=51 // pred_check
          %p479 = pneg %p136
        $region66: #{tpu_custom_call.1} parent=51 // pred_check_branch
          %481 = sbr.rel (%p479) target = $region68
        $region67: #{tpu_custom_call.1} parent=51 // pred_region
          %483 = dma.done %s475, 128
        $region68: #{tpu_custom_call.1} parent=51 // pred_fallthru
          _
        %s484 = sand.u32 %s37, 1
        %s485 = scalar_lea.sflag [#allocation9], %s484
        %s486 = sand.u32 %s149, 1
        %s487 = smul.addr %s486, 8
        %s488 = scalar_lea.vmem [#allocation10], %s487
        // Predicated region
        $region69: #{tpu_custom_call.1} parent=51 // pred_check
          %p489 = pneg %p162
        $region70: #{tpu_custom_call.1} parent=51 // pred_check_branch
          %491 = sbr.rel (%p489) target = $region72
        $region71: #{tpu_custom_call.1} parent=51 // pred_region
          %493 = dma.done %s485, 128
        $region72: #{tpu_custom_call.1} parent=51 // pred_fallthru
          _
        %s494 = sand.u32 %s37, 1
        %s495 = scalar_lea.sflag [#allocation12], %s494
        %s496 = sand.u32 %s175, 1
        %s497 = smul.addr %s496, 8
        %s498 = scalar_lea.vmem [#allocation11], %s497
        // Predicated region
        $region73: #{tpu_custom_call.1} parent=51 // pred_check
          %p499 = pneg %p188
        $region74: #{tpu_custom_call.1} parent=51 // pred_check_branch
          %501 = sbr.rel (%p499) target = $region76
        $region75: #{tpu_custom_call.1} parent=51 // pred_region
          %503 = dma.done %s495, 128
        $region76: #{tpu_custom_call.1} parent=51 // pred_fallthru
          _
        %s504 = sand.u32 %s37, 1
        %s505 = scalar_lea.sflag [#allocation12], %s504
        %s506 = sand.u32 %s201, 1
        %s507 = smul.addr %s506, 8
        %s508 = scalar_lea.vmem [#allocation13], %s507
        // Predicated region
        $region77: #{tpu_custom_call.1} parent=51 // pred_check
          %p509 = pneg %p214
        $region78: #{tpu_custom_call.1} parent=51 // pred_check_branch
          %511 = sbr.rel (%p509) target = $region80
        $region79: #{tpu_custom_call.1} parent=51 // pred_region
          %513 = dma.done %s505, 128
        $region80: #{tpu_custom_call.1} parent=51 // pred_fallthru
          _
        %s514 = sand.u32 %s227, 1
        %s515 = scalar_lea.sflag [#allocation15], %s514
        %s516 = sand.u32 %s227, 1
        %s517 = smul.addr %s516, 8
        %s518 = scalar_lea.vmem [#allocation14], %s517
        // Predicated region
        $region81: #{tpu_custom_call.1} parent=51 // pred_check
          %p519 = pneg %p240
        $region82: #{tpu_custom_call.1} parent=51 // pred_check_branch
          %521 = sbr.rel (%p519) target = $region84
        $region83: #{tpu_custom_call.1} parent=51 // pred_region
          %523 = dma.done %s515, 128
        $region84: #{tpu_custom_call.1} parent=51 // pred_fallthru
          _
        %s524 = sand.u32 %s45, 1
        %s525 = scalar_lea.sflag [#allocation3], %s524
        %s526 = sand.u32 %s45, 1
        %s527 = smul.addr %s526, 8
        %s528 = scalar_lea.vmem [#allocation2], %s527
        %p529 = pneg %p58
        %p530 = pneg %p55
        %s531 = sand.u32 %s37, 1
        %s532 = scalar_lea.sflag [#allocation6], %s531
        %s533 = sand.u32 %s71, 1
        %s534 = smul.addr %s533, 8
        %s535 = scalar_lea.vmem [#allocation5], %s534
        %p536 = pneg %p84
        %p537 = pneg %p81
        %s538 = sand.u32 %s37, 1
        %s539 = scalar_lea.sflag [#allocation6], %s538
        %s540 = sand.u32 %s97, 1
        %s541 = smul.addr %s540, 8
        %s542 = scalar_lea.vmem [#allocation7], %s541
        %p543 = pneg %p110
        %p544 = pneg %p107
        %s545 = sand.u32 %s37, 1
        %s546 = scalar_lea.sflag [#allocation9], %s545
        %s547 = sand.u32 %s123, 1
        %s548 = smul.addr %s547, 8
        %s549 = scalar_lea.vmem [#allocation8], %s548
        %p550 = pneg %p136
        %p551 = pneg %p133
        %s552 = sand.u32 %s37, 1
        %s553 = scalar_lea.sflag [#allocation9], %s552
        %s554 = sand.u32 %s149, 1
        %s555 = smul.addr %s554, 8
        %s556 = scalar_lea.vmem [#allocation10], %s555
        %p557 = pneg %p162
        %p558 = pneg %p159
        %s559 = sand.u32 %s37, 1
        %s560 = scalar_lea.sflag [#allocation12], %s559
        %s561 = sand.u32 %s175, 1
        %s562 = smul.addr %s561, 8
        %s563 = scalar_lea.vmem [#allocation11], %s562
        %p564 = pneg %p188
        %p565 = pneg %p185
        %s566 = sand.u32 %s37, 1
        %s567 = scalar_lea.sflag [#allocation12], %s566
        %s568 = sand.u32 %s201, 1
        %s569 = smul.addr %s568, 8
        %s570 = scalar_lea.vmem [#allocation13], %s569
        %p571 = pneg %p214
        %p572 = pneg %p211
        %s573 = sand.u32 %s227, 1
        %s574 = scalar_lea.sflag [#allocation15], %s573
        %s575 = sand.u32 %s227, 1
        %s576 = smul.addr %s575, 8
        %s577 = scalar_lea.vmem [#allocation14], %s576
        %p578 = pneg %p240
        %p579 = pneg %p237
        %p580 = pneg %p266
        %p581 = pneg %p263
        %s582 = sand.u32 %s253, 1
        %s583 = scalar_lea.sflag [#allocation4], %s582
        %s584 = sand.u32 %s253, 1
        %s585 = smul.addr %s584, 8
        %s586 = scalar_lea.vmem [#allocation16], %s585
        %v587 = vld [vmem:[%s448] sm:$0xff]
        %v588 = vld [vmem:[%s458] sm:$0xff]
        %v589 = vmax.f32 %v587, %v588
        %v590 = vld [vmem:[%s468] sm:$0xff]
        %v591 = vmax.f32 %v589, %v590
        %v592 = vld [vmem:[%s478] sm:$0xff]
        %v593 = vmax.f32 %v591, %v592
        %v594 = vld [vmem:[%s488] sm:$0xff]
        %v595 = vmax.f32 %v593, %v594
        %v596 = vld [vmem:[%s498] sm:$0xff]
        %v597 = vmax.f32 %v595, %v596
        %v598 = vld [vmem:[%s508] sm:$0xff]
        %v599 = vmax.f32 %v597, %v598
        %v600 = vld [vmem:[%s518] sm:$0xff]
        %v601 = vmax.f32 %v599, %v600
        %602 = vst [vmem:[%s586] sm:$0xff] %v601
        %s603 = sand.u32 %s253, 1
        %s604 = scalar_lea.sflag [#allocation4], %s603
        %s605 = sand.u32 %s253, 1
        %s606 = smul.addr %s605, 8
        %s607 = scalar_lea.vmem [#allocation16], %s606
        // Predicated region
        $region85: #{tpu_custom_call.1} parent=51 // pred_check
          %p608 = pneg %p263
        $region86: #{tpu_custom_call.1} parent=51 // pred_check_branch
          %610 = sbr.rel (%p608) target = $region88
        $region87: #{tpu_custom_call.1} parent=51 // pred_region
          %612 = vsyncadd %s604, 0
          %s613 = smul.addr %s37, 8
          %s614 = scalar_lea.hbm %s8, %s613
          %s616 = sshll.u32 %s607, 4
          %s617 = int_to_ptr.vmem [resolvable:$true] %s616
          %s618 = sshll.u32 %s614, 4
          %s619 = int_to_ptr.hbm [resolvable:$true] %s618
          %621 = dma.vmem_to_hbm [thread:$0]  %s617, 128, %s619, %s604
        $region88: #{tpu_custom_call.1} parent=51 // pred_fallthru
          _
      $region52: #{tpu_custom_call.1} parent=5 // pred_fallthru
        _
      %p622 = scmp.le.s32.totalorder 2, %s32
      // Predicated region
      $region89: #{tpu_custom_call.1} parent=5 // pred_check
        %p623 = pneg %p622
      $region90: #{tpu_custom_call.1} parent=5 // pred_check_branch
        %625 = sbr.rel (%p623) target = $region92
      $region91: #{tpu_custom_call.1} parent=5 // pred_region
        %s626 = ssub.s32 %s32, 2
        // Predicated region
        $region93: #{tpu_custom_call.1} parent=91 // pred_check
          %p627 = pneg %p269
        $region94: #{tpu_custom_call.1} parent=91 // pred_check_branch
          %629 = sbr.rel (%p627) target = $region96
        $region95: #{tpu_custom_call.1} parent=91 // pred_region
          %s630 = sand.u32 %s254, 1
          %s631 = scalar_lea.sflag [#allocation4], %s630
          %s632 = sand.u32 %s254, 1
          %s633 = smul.addr %s632, 8
          %s634 = scalar_lea.vmem [#allocation16], %s633
          %636 = dma.done %s631, 128
        $region96: #{tpu_custom_call.1} parent=91 // pred_fallthru
          _
      $region92: #{tpu_custom_call.1} parent=5 // pred_fallthru
        _
    $region6: #{tpu_custom_call.1} parent=1 // loop_footer
      %s36 = sadd.s32 1, %s32
    $region7: #{tpu_custom_call.1} parent=1 // loop_footer_branch
      %31 = sbr.rel target = $region3
    $region8: #{tpu_custom_call.1} parent=1 // loop_exit
      _
    %637 = vsyncpa [#allocation3], 1
    %s638 = scalar_lea.sflag [#allocation3], 1
    %639 = vsyncpa %s638, 1
    %640 = vsyncpa [#allocation6], 1
    %s641 = scalar_lea.sflag [#allocation6], 1
    %642 = vsyncpa %s641, 1
    %643 = vsyncpa [#allocation9], 1
    %s644 = scalar_lea.sflag [#allocation9], 1
    %645 = vsyncpa %s644, 1
    %646 = vsyncpa [#allocation12], 1
    %s647 = scalar_lea.sflag [#allocation12], 1
    %648 = vsyncpa %s647, 1
    %649 = vsyncpa [#allocation15], 1
    %s650 = scalar_lea.sflag [#allocation15], 1
    %651 = vsyncpa %s650, 1
    %652 = vsyncpa [#allocation4], 1
    %s653 = scalar_lea.sflag [#allocation4], 1
    %654 = vsyncpa %s653, 1

</llo_original>
